<compile_context>
chip_gen: v7x
topology: tpu7x:2x2x1
jax: 0.10.0
libtpu: 0.0.40
codegen_flags: <defaults>
</compile_context>

<pallas_src>
import numpy as np
import jax
import jax.numpy as jnp
from jax.experimental import pallas as pl
from jax.experimental.pallas import tpu as pltpu


def _round_up(v, m):
    return (v + m - 1) // m * m


def _elu(v):
    # ELU(alpha=1); clamp exp arg so the unselected branch never produces inf.
    return jnp.where(v > 0, v, jnp.exp(jnp.minimum(v, 0.0)) - 1.0)


# ----------------------------- node linear kernel -----------------------------

def node_linear_kernel(x_ref, w_ref, b_ref, h_ref):
    h_ref[...] = (jnp.dot(x_ref[...], w_ref[...], preferred_element_type=jnp.float32)
                  + b_ref[...]).astype(h_ref.dtype)


def node_linear(x, w, b, *, row_tile=128):
    N, in_dim = x.shape
    dim = w.shape[1]
    TN = min(row_tile, _round_up(N, 8))
    N_pad = _round_up(N, TN)
    x_p = jnp.pad(x, ((0, N_pad - N), (0, 0)))
    h_p = pl.pallas_call(
        node_linear_kernel,
        out_shape=jax.ShapeDtypeStruct((N_pad, dim), jnp.float32),
        grid=(N_pad // TN,),
        in_specs=[
            pl.BlockSpec((TN, in_dim), lambda i: (i, 0)),
            pl.BlockSpec((in_dim, dim), lambda i: (0, 0)),
            pl.BlockSpec((1, dim), lambda i: (0, 0)),
        ],
        out_specs=pl.BlockSpec((TN, dim), lambda i: (i, 0)),
        compiler_params=pltpu.CompilerParams(dimension_semantics=("parallel",)),
    )(x_p, w, b)
    return h_p[:N]


# ------------------------------ fused edge kernel ------------------------------

def edge_kernel(he_ref, dist_ref, em_ref, be_ref, attn_ref, wrbf_ref,
                wread_ref, bread_ref, atom_ref, sum_ref, max_ref):
    f32 = jnp.float32
    i = pl.program_id(0)

    @pl.when(i == 0)
    def _init():
        sum_ref[...] = jnp.zeros_like(sum_ref)
        max_ref[...] = jnp.full_like(max_ref, -jnp.inf)

    # ELU(h_src + h_dst) — the per-edge sum is precomputed in the wrapper.
    xe = _elu(he_ref[...])                                   # (TE, dim)

    # RBF expansion + linear_rbf as an unrolled G-term VPU FMA (G = 6, no MXU round-trip).
    # Single VMEM load of the (G, dim) weight; static row slices on the loaded value.
    dist = dist_ref[...]                                     # (TE, 1)
    wrbf = wrbf_ref[...]                                     # (G, dim)
    G = wrbf.shape[0]
    step = 5.0 / (G - 1)
    gamma2 = 1.0 / (step * step)
    dist_emd = jnp.zeros_like(xe)
    for k in range(G):                                       # static unroll
        rk = jnp.exp(-gamma2 * jnp.square(dist - (k * step)))      # (TE, 1)
        dist_emd = dist_emd + rk * wrbf[k:k + 1, :]                # (TE, dim)
    xe = xe * dist_emd

    # attention-style elementwise scaling + ELU
    atom = _elu(xe * attn_ref[...])                          # (TE, dim)
    atom_ref[...] = atom

    # ReadoutPhase: sigmoid(w_read . atom + b) weighted sum pool + max pool.
    logit = jnp.sum(atom * wread_ref[...], axis=1, keepdims=True) + bread_ref[...]
    score = 1.0 / (1.0 + jnp.exp(-logit))                    # (TE, 1) sigmoid (EUP)
    weighted = score * atom                                  # (TE, dim)

    # segment-sum: one-hot (TE, B) contracted over edges on the MXU; accumulate into the
    # resident (B, dim) output across E blocks.  Padded edges have all-zero one-hot rows.
    em = em_ref[...]                                         # (TE, B) exact one-hot, f32
    sum_ref[...] += jax.lax.dot_general(
        em, weighted, dimension_numbers=(((0,), (0,)), ((), ())),
        preferred_element_type=f32)

    # segment-max: per-molecule masked (TE, dim) reduce.  Padded edges carry batch id -1
    # and never match.  For small B: static unroll + static-slice stores (no dynamic
    # masked stores, no loop overhead).  Large-B fallback uses fori_loop + pl.ds.
    be = be_ref[...]                                         # (TE, 1) int32
    neg_inf = jnp.float32(-jnp.inf)
    B = max_ref.shape[0]

    if B <= 32:
        for b in range(B):                                   # static unroll
            mask = be == b                                   # (TE, 1)
            blk = jnp.max(jnp.where(mask, atom, neg_inf), axis=0, keepdims=True)  # (1, dim)
            max_ref[b:b + 1, :] = jnp.maximum(max_ref[b:b + 1, :], blk)
    else:
        def mol_max(b, carry):
            mask = be == b
            blk = jnp.max(jnp.where(mask, atom, neg_inf), axis=0, keepdims=True)
            cur = max_ref[pl.ds(b, 1), :]
            max_ref[pl.ds(b, 1), :] = jnp.maximum(cur, blk)
            return carry

        jax.lax.fori_loop(0, B, mol_max, 0)


# --------------------------------- layer wrapper ---------------------------------

def lineevo_layer(params, x, pos, edges, batch, num_mols, *, edge_tile=256):
    """One LineEvoLayer forward. Returns (atom_repr, pos, batch_e, mol_repr)."""
    N, _ = x.shape
    E = edges.shape[0]
    dim = params["w"].shape[1]
    G = params["w_rbf"].shape[0]
    B = int(num_mols)

    # 1) node linear (Pallas, gridded over N)
    h = node_linear(x, params["w"], params["b"])             # (N, dim) f32

    # 2) edge-level gathers + positional glue in the wrapper (plain XLA gathers —
    #    removes the O(E*N) one-hot matmuls and their VMEM footprint entirely).
    src = edges[:, 0].astype(jnp.int32)
    dst = edges[:, 1].astype(jnp.int32)
    he = h[src] + h[dst]                                     # (E, dim)
    pos_src = pos[src]
    pos_dst = pos[dst]
    vec = pos_dst - pos_src
    dist = jnp.maximum(jnp.sqrt(jnp.sum(vec * vec, axis=1, keepdims=True)), 0.1)  # (E, 1)
    pos_out = (pos_src + pos_dst) * 0.5                      # (E, 3), lane-sparse -> wrapper
    batch_e = batch[src].astype(jnp.int32)                   # (E,)
    edge_mol = (batch_e[:, None] ==
                jnp.arange(B, dtype=jnp.int32)[None, :]).astype(jnp.float32)      # (E, B)

    # 3) pad E up to the edge tile so the kernel grid sees full (TE, *) blocks.
    TE = min(edge_tile, _round_up(E, 8))
    E_pad = _round_up(E, TE)
    pad = E_pad - E
    he_p = jnp.pad(he, ((0, pad), (0, 0)))
    dist_p = jnp.pad(dist, ((0, pad), (0, 0)))
    em_p = jnp.pad(edge_mol, ((0, pad), (0, 0)))             # zero rows -> no contribution
    be_p = jnp.pad(batch_e.reshape(E, 1), ((0, pad), (0, 0)), constant_values=-1)

    # 4) fused edge kernel, gridded over E blocks with resident (B, dim) pool accumulators.
    out_shapes = (
        jax.ShapeDtypeStruct((E_pad, dim), jnp.float32),     # atom_repr (padded)
        jax.ShapeDtypeStruct((B, dim), jnp.float32),         # weighted-sum pool
        jax.ShapeDtypeStruct((B, dim), jnp.float32),         # max pool
    )
    in_specs = [
        pl.BlockSpec((TE, dim), lambda i: (i, 0)),           # h_src + h_dst
        pl.BlockSpec((TE, 1), lambda i: (i, 0)),             # clamped distance
        pl.BlockSpec((TE, B), lambda i: (i, 0)),             # edge->molecule one-hot
        pl.BlockSpec((TE, 1), lambda i: (i, 0)),             # edge batch ids (int32)
        pl.BlockSpec((1, dim), lambda i: (0, 0)),            # attn
        pl.BlockSpec((G, dim), lambda i: (0, 0)),            # linear_rbf weight
        pl.BlockSpec((1, dim), lambda i: (0, 0)),            # readout weighting (row)
        pl.BlockSpec((1, 1), lambda i: (0, 0)),              # readout bias
    ]
    out_specs = (
        pl.BlockSpec((TE, dim), lambda i: (i, 0)),
        pl.BlockSpec((B, dim), lambda i: (0, 0)),
        pl.BlockSpec((B, dim), lambda i: (0, 0)),
    )
    flops = 2 * E_pad * B * dim + 16 * E_pad * dim
    trans = 2 * E_pad * dim + (G + 1) * E_pad
    bytes_acc = 4 * (2 * E_pad * dim + E_pad * (B + 2) + 2 * B * dim + 4 * dim)

    atom_p, out_sum, out_max = pl.pallas_call(
        edge_kernel,
        out_shape=out_shapes,
        grid=(E_pad // TE,),
        in_specs=in_specs,
        out_specs=out_specs,
        compiler_params=pltpu.CompilerParams(
            dimension_semantics=("arbitrary",),              # carries pool accumulators
            vmem_limit_bytes=32 * 1024 * 1024),
        cost_estimate=pl.CostEstimate(
            flops=int(flops), transcendentals=int(trans), bytes_accessed=int(bytes_acc)),
    )(he_p, dist_p, em_p, be_p, params["attn"], params["w_rbf"],
      params["w_read"], params["b_read"])

    atom = atom_p[:E]
    mol = jnp.concatenate([out_sum, out_max], axis=1)        # (B, 2*dim)
    # TODO(synk): molecules with zero incident edges keep -inf in the max half, matching
    #             the segment_max reference behaviour (none occur in this test).
    return atom, pos_out, batch_e, mol


def lineevo_forward(layer_params_list, x, pos, batch, edges_list, num_mols):
    """LineEvo.forward: sum of per-layer mol_repr."""
    dim = layer_params_list[0]["w"].shape[1]
    mol_repr_all = jnp.zeros((num_mols, 2 * dim), jnp.float32)
    for params, edges in zip(layer_params_list, edges_list):
        x, pos, batch, mol_repr = lineevo_layer(params, x, pos, edges, batch, num_mols)
        mol_repr_all = mol_repr_all + mol_repr
    return mol_repr_all


# ------------------------ deterministic parameter init ------------------------

def _xavier_uniform(key, torch_shape):
    fan_out, fan_in = torch_shape
    bound = float(np.sqrt(6.0 / (fan_in + fan_out)))
    return jax.random.uniform(key, torch_shape, jnp.float32, -bound, bound)


def init_layer_params(key, in_dim, dim, num_gaussians=6):
    k1, k2, k3, k4 = jax.random.split(key, 4)
    w_t = _xavier_uniform(k1, (dim, in_dim))          # torch Linear weight (out, in)
    attn = _xavier_uniform(k2, (1, dim))
    w_rbf_t = _xavier_uniform(k3, (dim, num_gaussians))
    w_read = _xavier_uniform(k4, (1, dim))            # ReadoutPhase weighting (row form)
    return {
        "w": w_t.T,                                   # (in_dim, dim)
        "b": jnp.zeros((1, dim), jnp.float32),
        "attn": attn,                                 # (1, dim)
        "w_rbf": w_rbf_t.T,                           # (G, dim)
        "w_read": w_read,                             # (1, dim)
        "b_read": jnp.zeros((1, 1), jnp.float32),
    }


# ------------------------ pure-JAX reference for checking ------------------------

def reference_layer(params, x, pos, edges, batch, num_mols):
    h = x @ params["w"] + params["b"]
    src, dst = edges[:, 0], edges[:, 1]
    xe = jax.nn.elu(h[src] + h[dst])
    pos_src, pos_dst = pos[src], pos[dst]
    dist = jnp.maximum(jnp.linalg.norm(pos_dst - pos_src, axis=1, keepdims=True), 0.1)
    G = params["w_rbf"].shape[0]
    centers = jnp.linspace(0.0, 5.0, G)
    gamma = (G - 1) / 5.0
    rbf = jnp.exp(-(gamma ** 2) * (dist - centers[None, :]) ** 2)
    xe = xe * (rbf @ params["w_rbf"])
    pos_new = (pos_src + pos_dst) / 2.0
    atom = jax.nn.elu(xe * params["attn"])
    batch_e = batch[src]
    score = jax.nn.sigmoid(atom @ params["w_read"].T + params["b_read"])
    out_sum = jax.ops.segment_sum(score * atom, batch_e, num_segments=num_mols)
    out_max = jax.ops.segment_max(atom, batch_e, num_segments=num_mols)
    return atom, pos_new, batch_e, jnp.concatenate([out_sum, out_max], axis=1)


if __name__ == "__main__":
    key = jax.random.PRNGKey(0)
    # LineEvo defaults: in_dim=63, dim=128 (lane-dense outputs), 1 layer, if_pos=True.
    N, in_dim, dim, B = 8, 63, 128, 2
    kx, kp, kparam = jax.random.split(key, 3)

    x = jax.random.normal(kx, (N, in_dim), jnp.float32)
    pos = jax.random.normal(kp, (N, 3), jnp.float32)
    # deterministic edge list (E = 12): a ring plus a few chords; both molecules covered
    ring = np.stack([np.arange(N), (np.arange(N) + 1) % N], axis=1)
    extra = np.array([[0, 2], [1, 3], [4, 6], [5, 7]])
    edges = jnp.asarray(np.concatenate([ring, extra], axis=0), jnp.int32)   # (12, 2)
    batch = jnp.asarray(np.array([0, 0, 0, 0, 1, 1, 1, 1]), jnp.int32)      # (8,)

    params = init_layer_params(kparam, in_dim, dim)

    # full forward (single layer)
    mol_repr_all = lineevo_forward([params], x, pos, batch, [edges], B)
    jax.block_until_ready(mol_repr_all)

    # correctness check against a pure-JAX reference
    atom_k, pos_k, batch_e_k, mol_k = lineevo_layer(params, x, pos, edges, batch, B)
    atom_r, pos_r, batch_e_r, mol_r = reference_layer(params, x, pos, edges, batch, B)
    assert np.allclose(np.asarray(mol_repr_all), np.asarray(mol_r), atol=1e-4, rtol=1e-4)
    assert np.allclose(np.asarray(mol_k), np.asarray(mol_r), atol=1e-4, rtol=1e-4)
    assert np.allclose(np.asarray(atom_k), np.asarray(atom_r), atol=1e-4, rtol=1e-4)
    assert np.allclose(np.asarray(pos_k), np.asarray(pos_r), atol=1e-5, rtol=1e-5)
    assert np.array_equal(np.asarray(batch_e_k), np.asarray(batch_e_r))

    print("KERNEL_OK")
</pallas_src>

<mosaic_0001>
module attributes {stable_mosaic.version = 11 : i64} {
  func.func @node_linear_kernel(%arg0: i32, %arg1: memref<8x63xf32, #tpu.memory_space<vmem>>, %arg2: memref<63x128xf32, #tpu.memory_space<vmem>>, %arg3: memref<1x128xf32, #tpu.memory_space<vmem>>, %arg4: memref<8x128xf32, #tpu.memory_space<vmem>>) attributes {dimension_semantics = [#tpu.dimension_semantics<parallel>], iteration_bounds = array<i64: 1>, scalar_prefetch = 0 : i64, scratch_operands = 0 : i64, tpu.core_type = #tpu.core_type<tc>, window_params = [{transform_indices = @transform_0, window_bounds = array<i64: 8, 63>}, {pipeline_mode = #tpu.pipeline_mode<synchronous>, transform_indices = @transform_1, window_bounds = array<i64: 63, 128>}, {pipeline_mode = #tpu.pipeline_mode<synchronous>, transform_indices = @transform_2, window_bounds = array<i64: 1, 128>}, {transform_indices = @transform_3, window_bounds = array<i64: 8, 128>}]} {
    %c0 = arith.constant 0 : index
    %c0_0 = arith.constant 0 : index
    %0 = vector.load %arg1[%c0, %c0_0] : memref<8x63xf32, #tpu.memory_space<vmem>>, vector<8x63xf32>
    %c0_1 = arith.constant 0 : index
    %c0_2 = arith.constant 0 : index
    %1 = vector.load %arg2[%c0_1, %c0_2] : memref<63x128xf32, #tpu.memory_space<vmem>>, vector<63x128xf32>
    %cst = arith.constant dense<0.000000e+00> : vector<8x128xf32>
    %2 = tpu.matmul %0, %1, %cst {dimension_numbers = #tpu.dot_dimension_numbers<[1], [0], [0], [1], [0, 0, 1, 1], [], []>} : vector<8x63xf32>, vector<63x128xf32>, vector<8x128xf32> -> vector<8x128xf32>
    %c0_3 = arith.constant 0 : index
    %c0_4 = arith.constant 0 : index
    %3 = vector.load %arg3[%c0_3, %c0_4] : memref<1x128xf32, #tpu.memory_space<vmem>>, vector<1x128xf32>
    %4 = vector.broadcast %3 : vector<1x128xf32> to vector<8x128xf32>
    %5 = arith.addf %2, %4 : vector<8x128xf32>
    %c0_5 = arith.constant 0 : index
    %c0_6 = arith.constant 0 : index
    %6 = vector.load %arg4[%c0_5, %c0_6] : memref<8x128xf32, #tpu.memory_space<vmem>>, vector<8x128xf32>
    tpu.vector_store %arg4[%c0_5, %c0_6], %5 {strides = array<i32>} : memref<8x128xf32, #tpu.memory_space<vmem>>, vector<8x128xf32>,
    return
  }
  func.func @transform_0(%arg0: i32) -> (i32, i32) {
    %c0_i32 = arith.constant 0 : i32
    %c0_i32_0 = arith.constant 0 : i32
    return %arg0, %c0_i32 : i32, i32
  }
  func.func @transform_1(%arg0: i32) -> (i32, i32) {
    %c0_i32 = arith.constant 0 : i32
    %c0_i32_0 = arith.constant 0 : i32
    %c0_i32_1 = arith.constant 0 : i32
    return %c0_i32, %c0_i32_0 : i32, i32
  }
  func.func @transform_2(%arg0: i32) -> (i32, i32) {
    %c0_i32 = arith.constant 0 : i32
    %c0_i32_0 = arith.constant 0 : i32
    %c0_i32_1 = arith.constant 0 : i32
    return %c0_i32, %c0_i32_0 : i32, i32
  }
  func.func @transform_3(%arg0: i32) -> (i32, i32) {
    %c0_i32 = arith.constant 0 : i32
    %c0_i32_0 = arith.constant 0 : i32
    return %arg0, %c0_i32 : i32, i32
  }
}

</mosaic_0001>

<llo_original>
// kernel: tpu_custom_call.1
$region0: #{tpu_custom_call.1}
  #allocation0 [shape = 'u32[]', space=smem, size = 0x4, offset = 0x4, fixed_abs, tag = 'smem constant byte address 0x4 - core index']
  #allocation1 [shape = 'u32[144,128]{1,0:T(1,128)}', space=vmem, size = 0x12000, scoped, tag = 'internal scratch']
  %s0 = inlined_call_operand.hbm [shape: f32[8,63], index: 0, kind: input, shape index: {}]
  %s1 = inlined_call_operand.hbm [shape: f32[63,128], index: 1, kind: input, shape index: {}]
  %s2 = inlined_call_operand.vmem [shape: f32[1,128], index: 2, kind: input, shape index: {}]
  %s3 = inlined_call_operand.hbm [shape: f32[8,128], index: 3, kind: output, shape index: {}]
  %s4 = sld [smem:[#allocation0]]
  $region30: #{tpu_custom_call.1} parent=0
    _
  %s6 = ssub.s32 1, %s4
  %s7 = scalar_select 0, %s6, %s4
  $region1: #{tpu_custom_call.1} parent=0
    #allocation2 [shape = 'u8[4096]{0}', space=vmem, size = 0x1000, scoped, tag = 'input window, operand 0, single buffered']
    #allocation3 [shape = 's32[1]{0}', space=sflag, size = 0x4, scoped, tag = 'scoped memory for tpu_custom_call.1']
    #allocation4 [shape = 's32[1]{0}', space=sflag, size = 0x4, scoped, tag = 'scoped memory for tpu_custom_call.1']
    #allocation5 [shape = 'u8[32768]{0}', space=vmem, size = 0x8000, scoped, tag = 'input window, operand 1, single buffered']
    #allocation6 [shape = 's32[1]{0}', space=sflag, size = 0x4, scoped, tag = 'scoped memory for tpu_custom_call.1']
    #allocation7 [shape = 'u8[4096]{0}', space=vmem, size = 0x1000, scoped, tag = 'output window, operand 0, single buffered']
    %8 = vsyncpa [#allocation3], 0
    %9 = vsyncpa [#allocation6], 0
    %10 = vsyncpa [#allocation4], 0
    // Predicated region
    $region2: #{tpu_custom_call.1} parent=1 // pred_check
      _
    $region3: #{tpu_custom_call.1} parent=1 // pred_check_branch
      %12 = sbr.rel (0) target = $region5
    $region4: #{tpu_custom_call.1} parent=1 // pred_region
      %s14 = ssub.s32 128, 128
      %15 = vsyncadd [#allocation3], %s14
      %s17 = sshll.u32 [#allocation2], 4
      %s18 = int_to_ptr.vmem [resolvable:$true] %s17
      %20 = dma.hbm_to_vmem [thread:$0]  %s0, 128, %s18, [#allocation3]
    $region5: #{tpu_custom_call.1} parent=1 // pred_fallthru
      _
    // Predicated region
    $region6: #{tpu_custom_call.1} parent=1 // pred_check
      _
    $region7: #{tpu_custom_call.1} parent=1 // pred_check_branch
      %22 = sbr.rel (0) target = $region9
    $region8: #{tpu_custom_call.1} parent=1 // pred_region
      %s24 = ssub.s32 1024, 1024
      %25 = vsyncadd [#allocation6], %s24
      %s26 = sshll.u32 [#allocation5], 4
      %s27 = int_to_ptr.vmem [resolvable:$true] %s26
      %32 = dma.hbm_to_vmem [thread:$0]  %s1, 1024, %s27, [#allocation6], 128, 128, 8
    $region9: #{tpu_custom_call.1} parent=1 // pred_fallthru
      _
    // Predicated region
    $region10: #{tpu_custom_call.1} parent=1 // pred_check
      _
    $region11: #{tpu_custom_call.1} parent=1 // pred_check_branch
      %34 = sbr.rel (0) target = $region13
    $region12: #{tpu_custom_call.1} parent=1 // pred_region
      _
    $region13: #{tpu_custom_call.1} parent=1 // pred_fallthru
      _
    // Predicated region
    $region14: #{tpu_custom_call.1} parent=1 // pred_check
      _
    $region15: #{tpu_custom_call.1} parent=1 // pred_check_branch
      %36 = sbr.rel (0) target = $region17
    $region16: #{tpu_custom_call.1} parent=1 // pred_region
      %37 = dma.done [#allocation3], 128
    $region17: #{tpu_custom_call.1} parent=1 // pred_fallthru
      _
    // Predicated region
    $region18: #{tpu_custom_call.1} parent=1 // pred_check
      _
    $region19: #{tpu_custom_call.1} parent=1 // pred_check_branch
      %39 = sbr.rel (0) target = $region21
    $region20: #{tpu_custom_call.1} parent=1 // pred_region
      %40 = dma.done [#allocation6], 1024
    $region21: #{tpu_custom_call.1} parent=1 // pred_fallthru
      _
    %v41 = vld [vmem:[#allocation2] sm:$0xff]
    %v42 = vld [vmem:[#allocation5] sm:$0xff]
    %v43 = vld [vmem:[#allocation5 + $0x8] sm:$0xff]
    %v44 = vld [vmem:[#allocation5 + $0x10] sm:$0xff]
    %v45 = vld [vmem:[#allocation5 + $0x18] sm:$0xff]
    %v46 = vld [vmem:[#allocation5 + $0x20] sm:$0xff]
    %v47 = vld [vmem:[#allocation5 + $0x28] sm:$0xff]
    %v48 = vld [vmem:[#allocation5 + $0x30] sm:$0xff]
    %v49 = vld [vmem:[#allocation5 + $0x38] sm:$0x7f]
    %v50 = vld [vmem:[%s2] sm:$0x1]
    %v52 = vlaneseq
    %v53 = vshrl.u32 %v52, 7
    %v54 = vsub.s32 0, %v53
    %v55 = vrot.slane %v50, %v54
    %vm57 = vcmask 515072
    %v59 = vsel %vm57, %v41, 0
    %vm61 = vcmask 1046528
    %v63 = vsel %vm61, %v49, 0
    %65 = vmatprep.subr.mxu0 0.0
    %66 = vmatpush1.msra.mxu0 %v42
    %67 = vmatprep.subr.mxu0 0.0
    %68 = vmatpush1.msra.mxu0 %v43
    %69 = vmatprep.subr.mxu0 0.0
    %70 = vmatpush1.msra.mxu0 %v44
    %71 = vmatprep.subr.mxu0 0.0
    %72 = vmatpush1.msra.mxu0 %v45
    %73 = vmatprep.subr.mxu0 0.0
    %74 = vmatpush1.msra.mxu0 %v46
    %75 = vmatprep.subr.mxu0 0.0
    %76 = vmatpush1.msra.mxu0 %v47
    %77 = vmatprep.subr.mxu0 0.0
    %78 = vmatpush1.msra.mxu0 %v48
    %79 = vmatprep.subr.mxu0 0.0
    %80 = vmatpush1.msra.mxu0 %v63
    %81 = vmatprep.subr.mxu0 0.0
    %82 = vmatpush1.msra.mxu0 0.0
    %83 = vmatprep.subr.mxu0 0.0
    %84 = vmatpush1.msra.mxu0 0.0
    %85 = vmatprep.subr.mxu0 0.0
    %86 = vmatpush1.msra.mxu0 0.0
    %87 = vmatprep.subr.mxu0 0.0
    %88 = vmatpush1.msra.mxu0 0.0
    %89 = vmatprep.subr.mxu0 0.0
    %90 = vmatpush1.msra.mxu0 0.0
    %91 = vmatprep.subr.mxu0 0.0
    %92 = vmatpush1.msra.mxu0 0.0
    %93 = vmatprep.subr.mxu0 0.0
    %94 = vmatpush1.msra.mxu0 0.0
    %95 = vmatprep.subr.mxu0 0.0
    %96 = vmatpush1.msra.mxu0 0.0
    %97 = vmatprep.subr.mxu0 0.0
    %98 = vmatpush1.msra.mxu0 0.0
    %99 = vmatprep.subr.mxu0 0.0
    %100 = vmatpush1.msra.mxu0 0.0
    %101 = vmatprep.subr.mxu0 0.0
    %102 = vmatpush1.msra.mxu0 0.0
    %103 = vmatprep.subr.mxu0 0.0
    %104 = vmatpush1.msra.mxu0 0.0
    %105 = vmatprep.subr.mxu0 0.0
    %106 = vmatpush1.msra.mxu0 0.0
    %107 = vmatprep.subr.mxu0 0.0
    %108 = vmatpush1.msra.mxu0 0.0
    %109 = vmatprep.subr.mxu0 0.0
    %110 = vmatpush1.msra.mxu0 0.0
    %111 = vmatprep.subr.mxu0 0.0
    %112 = vmatpush1.msra.mxu0 0.0
    %113 = vmatprep.subr.mxu0 0.0
    %114 = vmatpush1.msra.mxu0 0.0
    %115 = vmatprep.subr.mxu0 0.0
    %116 = vmatpush1.msra.mxu0 0.0
    %117 = vmatprep.subr.mxu0 0.0
    %118 = vmatpush1.msra.mxu0 0.0
    %119 = vmatprep.subr.mxu0 0.0
    %120 = vmatpush1.msra.mxu0 0.0
    %121 = vmatprep.subr.mxu0 0.0
    %122 = vmatpush1.msra.mxu0 0.0
    %123 = vmatprep.subr.mxu0 0.0
    %124 = vmatpush1.msra.mxu0 0.0
    %125 = vmatprep.subr.mxu0 0.0
    %126 = vmatpush1.msra.mxu0 0.0
    %127 = vmatprep.subr.mxu0 0.0
    %128 = vmatpush1.msra.mxu0 0.0
    %129 = vmatprep.mubr.f32.mxu0 0.0
    %130 = vmatmul.mubr.f32.gmra.mrb[0].mxu0 %v59
    %v131 = vpop.f32.mrb[0].mxu0
    %v132 = vadd.f32 %v55, %v131
    %v133 = vpop.f32.mrb[0].mxu0
    %134 = vdwg.mxu0
    %135 = vst [vmem:[#allocation7] sm:$0xff] %v132
    // Predicated region
    $region22: #{tpu_custom_call.1} parent=1 // pred_check
      _
    $region23: #{tpu_custom_call.1} parent=1 // pred_check_branch
      %137 = sbr.rel (0) target = $region25
    $region24: #{tpu_custom_call.1} parent=1 // pred_region
      %s139 = ssub.s32 128, 128
      %140 = vsyncadd [#allocation4], %s139
      %s142 = sshll.u32 [#allocation7], 4
      %s143 = int_to_ptr.vmem [resolvable:$true] %s142
      %145 = dma.vmem_to_hbm [thread:$0]  %s143, 128, %s3, [#allocation4]
    $region25: #{tpu_custom_call.1} parent=1 // pred_fallthru
      _
    // Predicated region
    $region26: #{tpu_custom_call.1} parent=1 // pred_check
      _
    $region27: #{tpu_custom_call.1} parent=1 // pred_check_branch
      %147 = sbr.rel (0) target = $region29
    $region28: #{tpu_custom_call.1} parent=1 // pred_region
      %148 = dma.done [#allocation4], 128
    $region29: #{tpu_custom_call.1} parent=1 // pred_fallthru
      _
    %149 = vsyncpa [#allocation3], 1
    %150 = vsyncpa [#allocation6], 1
    %151 = vsyncpa [#allocation4], 1

</llo_original>
